<compile_context>
chip_gen: v5e
topology: v5e:2x2
jax: 0.10.0
libtpu: 0.0.40
codegen_flags: <defaults>
</compile_context>

<pallas_src>
import functools

import jax
import jax.numpy as jnp
from jax.experimental import pallas as pl
from jax.experimental.pallas import tpu as pltpu


# ----------------------------- Pallas kernel --------------------------------
def _gear_encoder_kernel(x_ref, w1_ref, b1_ref, w2_ref, b2_ref, o_ref, *,
                         compute_dtype):
    """Fused Linear->ReLU->Linear->ReLU on one batch tile.

    x_ref  : (tb, input_dim)            caller dtype (f32 here); cast in-kernel
    w1_ref : (input_dim, latent_dim)    bf16, VMEM-resident
    b1_ref : (1, latent_dim)            f32,  VMEM-resident
    w2_ref : (latent_dim, output_dim)   bf16, VMEM-resident
    b2_ref : (1, output_dim)            f32,  VMEM-resident
    o_ref  : (tb, output_dim)           f32
    """
    x = x_ref[...].astype(compute_dtype)            # VPU cast, hidden under DMA

    # fc1 + ReLU  (MXU matmul, f32 accumulate; bias/ReLU stay f32 on the VPU)
    h = jnp.dot(x, w1_ref[...], preferred_element_type=jnp.float32) + b1_ref[...]
    h = jnp.maximum(h, 0.0)

    # fc2 + ReLU
    y = jnp.dot(h.astype(compute_dtype), w2_ref[...],
                preferred_element_type=jnp.float32) + b2_ref[...]
    o_ref[...] = jnp.maximum(y, 0.0).astype(o_ref.dtype)


# ------------------------------ packing --------------------------------------
def _round_up(n, m):
    return ((n + m - 1) // m) * m


def pack_params(w1, b1, w2, b2, *, compute_dtype=jnp.bfloat16):
    """Store parameters in kernel-ready layout (weights (in, out) == torch .weight.T)."""
    input_dim, latent_dim = w1.shape
    output_dim = w2.shape[1]
    return {
        "w1": jnp.asarray(w1, compute_dtype),                       # (in, latent)
        "b1": jnp.asarray(b1, jnp.float32).reshape(1, latent_dim),  # (1, latent)
        "w2": jnp.asarray(w2, compute_dtype),                       # (latent, out)
        "b2": jnp.asarray(b2, jnp.float32).reshape(1, output_dim),  # (1, out)
        "input_dim": input_dim,
        "latent_dim": latent_dim,
        "output_dim": output_dim,
        "compute_dtype": compute_dtype,
    }


# ------------------------------ wrapper ---------------------------------------
def forward_gear_encoder(x, params, *, batch_tile=4096, min_grid_steps=4):
    """Pallas implementation of ForwardGearEncoder.forward."""
    squeeze = False
    if x.ndim == 1:
        x = x[None, :]
        squeeze = True
    B, input_dim = x.shape
    assert input_dim == params["input_dim"]
    latent_dim = params["latent_dim"]
    output_dim = params["output_dim"]
    compute_dtype = params["compute_dtype"]

    # Batch tile selection:
    #  - small B: a single full-extent block (always layout-legal).
    #  - large B: big tiles (multiple of 16, capped at batch_tile) but at least
    #    `min_grid_steps` grid steps so both v7x TensorCores get work.
    tb_cap = max(16, _round_up(batch_tile, 16))
    if B > 256:
        tb = min(tb_cap, _round_up(pl.cdiv(B, min_grid_steps), 16))
    else:
        tb = B
    grid = pl.cdiv(B, tb)

    kernel = functools.partial(_gear_encoder_kernel, compute_dtype=compute_dtype)

    w_itemsize = jnp.dtype(compute_dtype).itemsize
    flops = 2 * B * (input_dim * latent_dim + latent_dim * output_dim)
    bytes_accessed = (B * input_dim * x.dtype.itemsize                    # x
                      + (params["w1"].size + params["w2"].size) * w_itemsize
                      + (params["b1"].size + params["b2"].size) * 4
                      + B * output_dim * 4)                               # output

    out = pl.pallas_call(
        kernel,
        out_shape=jax.ShapeDtypeStruct((B, output_dim), jnp.float32),
        grid=(grid,),
        in_specs=[
            pl.BlockSpec((tb, input_dim), lambda i: (i, 0)),          # x: batch-tiled
            pl.BlockSpec((input_dim, latent_dim), lambda i: (0, 0)),  # W1: resident
            pl.BlockSpec((1, latent_dim), lambda i: (0, 0)),          # b1: resident
            pl.BlockSpec((latent_dim, output_dim), lambda i: (0, 0)), # W2: resident
            pl.BlockSpec((1, output_dim), lambda i: (0, 0)),          # b2: resident
        ],
        out_specs=pl.BlockSpec((tb, output_dim), lambda i: (i, 0)),
        compiler_params=pltpu.CompilerParams(
            dimension_semantics=("parallel",)),       # shard batch across TCs on v7x
        cost_estimate=pl.CostEstimate(
            flops=flops, transcendentals=0, bytes_accessed=bytes_accessed),
    )(x, params["w1"], params["b1"], params["w2"], params["b2"])

    if squeeze:
        out = out[0]
    return out


# ------------------------- deterministic parameter init ----------------------
def init_params(key, input_dim, latent_dim, output_dim):
    """Mirror torch nn.Linear default init; weights stored (in, out)."""
    ks = jax.random.split(key, 4)

    def lin(kw, kb, fan_in, fan_out):
        bound = 1.0 / (fan_in ** 0.5)
        w = jax.random.uniform(kw, (fan_in, fan_out), jnp.float32, -bound, bound)
        b = jax.random.uniform(kb, (fan_out,), jnp.float32, -bound, bound)
        return w, b

    w1, b1 = lin(ks[0], ks[1], input_dim, latent_dim)
    w2, b2 = lin(ks[2], ks[3], latent_dim, output_dim)
    return w1, b1, w2, b2


# ----------------------------- reference (pure JAX) ---------------------------
def reference_forward(x, w1, b1, w2, b2, *, compute_dtype=jnp.bfloat16):
    """Pure-JAX reference applying the same bf16-input / f32-accumulate recipe."""
    if x.ndim == 1:
        x = x[None, :]
    h = jnp.dot(x.astype(compute_dtype), w1.astype(compute_dtype),
                preferred_element_type=jnp.float32) + b1
    h = jnp.maximum(h, 0.0)
    y = jnp.dot(h.astype(compute_dtype), w2.astype(compute_dtype),
                preferred_element_type=jnp.float32) + b2
    return jnp.maximum(y, 0.0)


if __name__ == "__main__":
    INPUT_DIM, LATENT_DIM, OUTPUT_DIM = 24, 32, 8

    key = jax.random.PRNGKey(0)
    kx, kp, kx2 = jax.random.split(key, 3)
    w1, b1, w2, b2 = init_params(kp, INPUT_DIM, LATENT_DIM, OUTPUT_DIM)
    packed = pack_params(w1, b1, w2, b2)            # pack once, reuse across calls

    # Small demo batch (B=2): single-step grid, full-extent blocks.
    x = jax.random.normal(kx, (2, INPUT_DIM), jnp.float32)
    out = jax.block_until_ready(forward_gear_encoder(x, packed))
    ref = reference_forward(x, w1, b1, w2, b2)
    assert out.shape == (2, OUTPUT_DIM), out.shape
    # bf16 rounding of the hidden activation can differ by an ulp between the
    # MXU and the XLA reference, so tolerance is bf16-scale rather than f32-scale.
    max_err = float(jnp.max(jnp.abs(out - ref)))
    assert jnp.allclose(out, ref, atol=2e-2, rtol=2e-2), f"max |diff| = {max_err}"

    # Larger batch (B=1000): multi-step grid with a partial last tile, exercises
    # the in-kernel cast + boundary (dropped-OOB-rows) path.
    x2 = jax.random.normal(kx2, (1000, INPUT_DIM), jnp.float32)
    out2 = jax.block_until_ready(forward_gear_encoder(x2, packed))
    ref2 = reference_forward(x2, w1, b1, w2, b2)
    assert out2.shape == (1000, OUTPUT_DIM), out2.shape
    max_err2 = float(jnp.max(jnp.abs(out2 - ref2)))
    assert jnp.allclose(out2, ref2, atol=2e-2, rtol=2e-2), f"max |diff| = {max_err2}"

    print("KERNEL_OK")
</pallas_src>

<mosaic_0001>
module attributes {stable_mosaic.version = 11 : i64} {
  func.func @_gear_encoder_kernel(%arg0: i32, %arg1: memref<2x24xf32, #tpu.memory_space<vmem>>, %arg2: memref<24x32xbf16, #tpu.memory_space<vmem>>, %arg3: memref<1x32xf32, #tpu.memory_space<vmem>>, %arg4: memref<32x8xbf16, #tpu.memory_space<vmem>>, %arg5: memref<1x8xf32, #tpu.memory_space<vmem>>, %arg6: memref<2x8xf32, #tpu.memory_space<vmem>>) attributes {dimension_semantics = [#tpu.dimension_semantics<parallel>], iteration_bounds = array<i64: 1>, scalar_prefetch = 0 : i64, scratch_operands = 0 : i64, tpu.core_type = #tpu.core_type<tc>, window_params = [{transform_indices = @transform_0, window_bounds = array<i64: 2, 24>}, {pipeline_mode = #tpu.pipeline_mode<synchronous>, transform_indices = @transform_1, window_bounds = array<i64: 24, 32>}, {pipeline_mode = #tpu.pipeline_mode<synchronous>, transform_indices = @transform_2, window_bounds = array<i64: 1, 32>}, {pipeline_mode = #tpu.pipeline_mode<synchronous>, transform_indices = @transform_3, window_bounds = array<i64: 32, 8>}, {pipeline_mode = #tpu.pipeline_mode<synchronous>, transform_indices = @transform_4, window_bounds = array<i64: 1, 8>}, {transform_indices = @transform_5, window_bounds = array<i64: 2, 8>}]} {
    %c0 = arith.constant 0 : index
    %c0_0 = arith.constant 0 : index
    %0 = vector.load %arg1[%c0, %c0_0] : memref<2x24xf32, #tpu.memory_space<vmem>>, vector<2x24xf32>
    %1 = arith.truncf %0 : vector<2x24xf32> to vector<2x24xbf16>
    %c0_1 = arith.constant 0 : index
    %c0_2 = arith.constant 0 : index
    %2 = vector.load %arg2[%c0_1, %c0_2] : memref<24x32xbf16, #tpu.memory_space<vmem>>, vector<24x32xbf16>
    %cst = arith.constant dense<0.000000e+00> : vector<2x32xf32>
    %3 = tpu.matmul %1, %2, %cst {dimension_numbers = #tpu.dot_dimension_numbers<[1], [0], [0], [1], [0, 0, 1, 1], [], []>} : vector<2x24xbf16>, vector<24x32xbf16>, vector<2x32xf32> -> vector<2x32xf32>
    %c0_3 = arith.constant 0 : index
    %c0_4 = arith.constant 0 : index
    %4 = vector.load %arg3[%c0_3, %c0_4] : memref<1x32xf32, #tpu.memory_space<vmem>>, vector<1x32xf32>
    %5 = vector.broadcast %4 : vector<1x32xf32> to vector<2x32xf32>
    %6 = arith.addf %3, %5 : vector<2x32xf32>
    %cst_5 = arith.constant 0.000000e+00 : f32
    %7 = vector.broadcast %cst_5 : f32 to vector<2x32xf32>
    %8 = arith.maximumf %6, %7 : vector<2x32xf32>
    %9 = arith.truncf %8 : vector<2x32xf32> to vector<2x32xbf16>
    %c0_6 = arith.constant 0 : index
    %c0_7 = arith.constant 0 : index
    %10 = vector.load %arg4[%c0_6, %c0_7] : memref<32x8xbf16, #tpu.memory_space<vmem>>, vector<32x8xbf16>
    %cst_8 = arith.constant dense<0.000000e+00> : vector<2x8xf32>
    %11 = tpu.matmul %9, %10, %cst_8 {dimension_numbers = #tpu.dot_dimension_numbers<[1], [0], [0], [1], [0, 0, 1, 1], [], []>} : vector<2x32xbf16>, vector<32x8xbf16>, vector<2x8xf32> -> vector<2x8xf32>
    %c0_9 = arith.constant 0 : index
    %c0_10 = arith.constant 0 : index
    %12 = vector.load %arg5[%c0_9, %c0_10] : memref<1x8xf32, #tpu.memory_space<vmem>>, vector<1x8xf32>
    %13 = vector.broadcast %12 : vector<1x8xf32> to vector<2x8xf32>
    %14 = arith.addf %11, %13 : vector<2x8xf32>
    %cst_11 = arith.constant 0.000000e+00 : f32
    %15 = vector.broadcast %cst_11 : f32 to vector<2x8xf32>
    %16 = arith.maximumf %14, %15 : vector<2x8xf32>
    %c0_12 = arith.constant 0 : index
    %c0_13 = arith.constant 0 : index
    %17 = vector.load %arg6[%c0_12, %c0_13] : memref<2x8xf32, #tpu.memory_space<vmem>>, vector<2x8xf32>
    tpu.vector_store %arg6[%c0_12, %c0_13], %16 {strides = array<i32>} : memref<2x8xf32, #tpu.memory_space<vmem>>, vector<2x8xf32>,
    return
  }
  func.func @transform_0(%arg0: i32) -> (i32, i32) {
    %c0_i32 = arith.constant 0 : i32
    %c0_i32_0 = arith.constant 0 : i32
    return %arg0, %c0_i32 : i32, i32
  }
  func.func @transform_1(%arg0: i32) -> (i32, i32) {
    %c0_i32 = arith.constant 0 : i32
    %c0_i32_0 = arith.constant 0 : i32
    %c0_i32_1 = arith.constant 0 : i32
    return %c0_i32, %c0_i32_0 : i32, i32
  }
  func.func @transform_2(%arg0: i32) -> (i32, i32) {
    %c0_i32 = arith.constant 0 : i32
    %c0_i32_0 = arith.constant 0 : i32
    %c0_i32_1 = arith.constant 0 : i32
    return %c0_i32, %c0_i32_0 : i32, i32
  }
  func.func @transform_3(%arg0: i32) -> (i32, i32) {
    %c0_i32 = arith.constant 0 : i32
    %c0_i32_0 = arith.constant 0 : i32
    %c0_i32_1 = arith.constant 0 : i32
    return %c0_i32, %c0_i32_0 : i32, i32
  }
  func.func @transform_4(%arg0: i32) -> (i32, i32) {
    %c0_i32 = arith.constant 0 : i32
    %c0_i32_0 = arith.constant 0 : i32
    %c0_i32_1 = arith.constant 0 : i32
    return %c0_i32, %c0_i32_0 : i32, i32
  }
  func.func @transform_5(%arg0: i32) -> (i32, i32) {
    %c0_i32 = arith.constant 0 : i32
    %c0_i32_0 = arith.constant 0 : i32
    return %arg0, %c0_i32 : i32, i32
  }
}

</mosaic_0001>

<llo_original>
// kernel: tpu_custom_call.1
$region0: #{tpu_custom_call.1}
  #allocation0 [shape = 'u32[]', space=smem, size = 0x4, offset = 0x4, fixed_abs, tag = 'smem constant byte address 0x4 - core index']
  #allocation1 [shape = 'u32[72,128]{1,0:T(1,128)}', space=vmem, size = 0x9000, scoped, tag = 'internal scratch']
  %s0 = inlined_call_operand.vmem [shape: f32[2,24], index: 0, kind: input, shape index: {}]
  %s1 = inlined_call_operand.vmem [shape: bf16[24,32], index: 1, kind: input, shape index: {}]
  %s2 = inlined_call_operand.vmem [shape: f32[1,32], index: 2, kind: input, shape index: {}]
  %s3 = inlined_call_operand.vmem [shape: bf16[32,8], index: 3, kind: input, shape index: {}]
  %s4 = inlined_call_operand.vmem [shape: f32[1,8], index: 4, kind: input, shape index: {}]
  %s5 = inlined_call_operand.hbm [shape: f32[2,8], index: 5, kind: output, shape index: {}]
  %s6 = sld [smem:[#allocation0]]
  $region30: #{tpu_custom_call.1} parent=0
    _
  %s8 = ssub.s32 1, %s6
  %s9 = scalar_select 0, %s8, %s6
  $region1: #{tpu_custom_call.1} parent=0
    #allocation2 [shape = 'u8[1024]{0}', space=vmem, size = 0x400, scoped, tag = 'output window, operand 0, single buffered']
    #allocation3 [shape = 's32[1]{0}', space=sflag, size = 0x4, scoped, tag = 'scoped memory for tpu_custom_call.1']
    %10 = vsyncpa [#allocation3], 0
    // Predicated region
    $region2: #{tpu_custom_call.1} parent=1 // pred_check
      _
    $region3: #{tpu_custom_call.1} parent=1 // pred_check_branch
      %12 = sbr.rel (0) target = $region5
    $region4: #{tpu_custom_call.1} parent=1 // pred_region
      _
    $region5: #{tpu_custom_call.1} parent=1 // pred_fallthru
      _
    // Predicated region
    $region6: #{tpu_custom_call.1} parent=1 // pred_check
      _
    $region7: #{tpu_custom_call.1} parent=1 // pred_check_branch
      %14 = sbr.rel (0) target = $region9
    $region8: #{tpu_custom_call.1} parent=1 // pred_region
      _
    $region9: #{tpu_custom_call.1} parent=1 // pred_fallthru
      _
    // Predicated region
    $region10: #{tpu_custom_call.1} parent=1 // pred_check
      _
    $region11: #{tpu_custom_call.1} parent=1 // pred_check_branch
      %16 = sbr.rel (0) target = $region13
    $region12: #{tpu_custom_call.1} parent=1 // pred_region
      _
    $region13: #{tpu_custom_call.1} parent=1 // pred_fallthru
      _
    // Predicated region
    $region14: #{tpu_custom_call.1} parent=1 // pred_check
      _
    $region15: #{tpu_custom_call.1} parent=1 // pred_check_branch
      %18 = sbr.rel (0) target = $region17
    $region16: #{tpu_custom_call.1} parent=1 // pred_region
      _
    $region17: #{tpu_custom_call.1} parent=1 // pred_fallthru
      _
    // Predicated region
    $region18: #{tpu_custom_call.1} parent=1 // pred_check
      _
    $region19: #{tpu_custom_call.1} parent=1 // pred_check_branch
      %20 = sbr.rel (0) target = $region21
    $region20: #{tpu_custom_call.1} parent=1 // pred_region
      _
    $region21: #{tpu_custom_call.1} parent=1 // pred_fallthru
      _
    %v22 = vld [vmem:[%s0] sm:$0x3]
    %v23 = vpack.c.bf16 %v22, %v22
    %v24 = vld [vmem:[%s1] sm:$0xf]
    %v25 = vld [vmem:[%s1 + $0x4] sm:$0xf]
    %v26 = vld [vmem:[%s1 + $0x8] sm:$0xf]
    %v27 = vld [vmem:[%s2] sm:$0x1]
    %v29 = vperm.slane %v27, 0
    %v34 = vunpack.c.l.b16 %v24
    %v35 = vunpack.c.l.b16 %v25
    %v36 = vunpack.c.l.b16 %v26
    %v37 = vpack.c.b16 %v35, %v34
    %v38 = vpack.c.b16 %v36, %v36
    %vm40 = vcmask 195584
    %v42 = vsel %vm40, %v23, 0
    %vm44 = vcmask 1043456
    %v46 = vsel %vm44, %v38, 0
    %48 = vmatpush.bf16.msra.mxu0 0
    %49 = vmatpush.bf16.msra.mxu0 0
    %50 = vmatpush.bf16.msra.mxu0 0
    %51 = vmatpush.bf16.msra.mxu0 0
    %52 = vmatpush.bf16.msra.mxu0 0
    %53 = vmatpush.bf16.msra.mxu0 0
    %54 = vmatpush.bf16.msra.mxu0 %v46
    %55 = vmatpush.bf16.msra.mxu0 %v37
    %56 = vmatmul.bf16.gmra.mxu0 %v42
    %v57 = vpop.f32.mrf.mxu0
    %v58 = vadd.f32 %v29, %v57
    %v59 = vpop.f32.mrf.mxu0
    %60 = vdwg.mxu0
    %v61 = vmax.f32 %v58, 0.0
    %v62 = vpack.c.bf16 %v61, %v61
    %v63 = vld [vmem:[%s3] sm:$0xf]
    %v64 = vld [vmem:[%s3 + $0x4] sm:$0xf]
    %v65 = vld [vmem:[%s3 + $0x8] sm:$0xf]
    %v66 = vld [vmem:[%s3 + $0xc] sm:$0xf]
    %v67 = vld [vmem:[%s4] sm:$0x1]
    %v69 = vperm.slane %v67, 0
    %v75 = vunpack.c.l.b16 %v63
    %v76 = vunpack.c.l.b16 %v64
    %v77 = vunpack.c.l.b16 %v65
    %v78 = vunpack.c.l.b16 %v66
    %v79 = vpack.c.b16 %v76, %v75
    %v80 = vpack.c.b16 %v78, %v77
    %vm83 = vcmask 261120
    %v85 = vsel %vm83, %v62, 0
    %87 = vmatpush.bf16.msra.mxu0 0
    %88 = vmatpush.bf16.msra.mxu0 0
    %89 = vmatpush.bf16.msra.mxu0 0
    %90 = vmatpush.bf16.msra.mxu0 0
    %91 = vmatpush.bf16.msra.mxu0 0
    %92 = vmatpush.bf16.msra.mxu0 0
    %93 = vmatpush.bf16.msra.mxu0 %v80
    %94 = vmatpush.bf16.msra.mxu0 %v79
    %95 = vmatmul.bf16.gmra.mxu0 %v85
    %v96 = vpop.f32.mrf.mxu0
    %v97 = vadd.f32 %v69, %v96
    %v98 = vpop.f32.mrf.mxu0
    %99 = vdwg.mxu0
    %v100 = vmax.f32 %v97, 0.0
    %vm101 = vcmask 58368
    %102 = vst.msk [vmem:[#allocation2] sm:$0x3] %vm101, %v100
    // Predicated region
    $region22: #{tpu_custom_call.1} parent=1 // pred_check
      _
    $region23: #{tpu_custom_call.1} parent=1 // pred_check_branch
      %104 = sbr.rel (0) target = $region25
    $region24: #{tpu_custom_call.1} parent=1 // pred_region
      %106 = vsyncadd [#allocation3], 0
      %s108 = sshll.u32 [#allocation2], 4
      %s109 = int_to_ptr.vmem [resolvable:$true] %s108
      %s110 = sshll.u32 %s5, 4
      %s111 = int_to_ptr.hbm [resolvable:$true] %s110
      %113 = dma.vmem_to_hbm [thread:$0]  %s109, 32, %s111, [#allocation3]
    $region25: #{tpu_custom_call.1} parent=1 // pred_fallthru
      _
    // Predicated region
    $region26: #{tpu_custom_call.1} parent=1 // pred_check
      _
    $region27: #{tpu_custom_call.1} parent=1 // pred_check_branch
      %115 = sbr.rel (0) target = $region29
    $region28: #{tpu_custom_call.1} parent=1 // pred_region
      %117 = dma.done [#allocation3], 32
    $region29: #{tpu_custom_call.1} parent=1 // pred_fallthru
      _
    %118 = vsyncpa [#allocation3], 1

</llo_original>
